<compile_context>
chip_gen: v7x
topology: tpu7x:2x2x1
jax: 0.10.0
libtpu: 0.0.40
codegen_flags: <defaults>
</compile_context>

<pallas_src>
import jax
import jax.numpy as jnp
import numpy as np
from jax.experimental import pallas as pl
from jax.experimental.pallas import tpu as pltpu

_LANE = 128


def _round_up(n, m=_LANE):
  return ((n + m - 1) // m) * m


def _layout(I, H, L):
  """Static (start, width) lane offsets of every segment in the packed slabs."""
  def pack(widths):
    offs, start = {}, 0
    for name, w in widths:
      offs[name] = (start, w)
      start += _round_up(w)
    return offs, start

  w_i = pack([("w_emb", H), ("w_ih", 4 * H)])                         # K = input_size
  w_h = pack([("attn_e", L), ("comb_e", I), ("attn_h", L), ("w_hh", 4 * H),
              ("comb_a", I), ("w1", H), ("w2", H), ("w3", H), ("w4", I)])  # K = hidden
  b = pack([("b_emb", H), ("b_attn", L), ("b_comb", I), ("b_gates", 4 * H),
            ("b1", H), ("b2", H), ("b3", H), ("b4", I)])
  return w_i, w_h, b


# -----------------------------------------------------------------------------
# Pallas kernel: embedder -> attention (softmax + weighted sum over encoder
# outputs) -> attn_combine -> 1-layer LSTM cell -> 4-layer ReLU MLP head.
# All weights arrive pre-packed in 3 lane-padded slabs; views carved statically.
# -----------------------------------------------------------------------------
def decoder_kernel(x_ref, h0_ref, c0_ref, enc_ref, wi_ref, wh_ref, b_ref, out_ref):
  f32 = jnp.float32
  x = x_ref[...]          # (B, I)
  h0 = h0_ref[...]        # (B, H)
  c0 = c0_ref[...]        # (B, H)
  B, I = x.shape
  H = h0.shape[-1]
  L = enc_ref.shape[0]
  (wi_l, _), (wh_l, _), (b_l, _) = _layout(I, H, L)

  def w_i(name):
    s, w = wi_l[name]
    return wi_ref[:, s:s + w]

  def w_h(name):
    s, w = wh_l[name]
    return wh_ref[:, s:s + w]

  def bias(name):
    s, w = b_l[name]
    return b_ref[:, s:s + w]

  # embedded = embedder(input)                                       (B, H)
  emb = jnp.dot(x, w_i("w_emb"), preferred_element_type=f32) + bias("b_emb")

  # Fused matmuls sharing an LHS (segments are 128-lane aligned):
  #   eo = emb @ [W_attn_e | W_comb_e]   -> logits_e | combine_e     (B, 128+I)
  #   ho = h0  @ [W_attn_h | W_hh]       -> logits_h | gates_h       (B, 128+4H)
  ae_s, _ = wh_l["attn_e"]
  ce_s, _ = wh_l["comb_e"]
  ah_s, _ = wh_l["attn_h"]
  hh_s, _ = wh_l["w_hh"]
  eo = jnp.dot(emb, wh_ref[:, ae_s:ce_s + I], preferred_element_type=f32)
  ho = jnp.dot(h0, wh_ref[:, ah_s:hh_s + 4 * H], preferred_element_type=f32)

  # attention softmax over encoder positions                          (B, L)
  logits = eo[:, 0:L] + ho[:, 0:L] + bias("b_attn")
  m = jnp.max(logits, axis=-1, keepdims=True)
  e = jnp.exp(logits - m)
  attn_w = e / jnp.sum(e, axis=-1, keepdims=True)

  # bmm(attn_weights, encoder_output.transpose(0,1)):
  #   attn_applied[b, :] = sum_l attn_w[b, l] * enc[l, b, :]          (B, H)
  enc = enc_ref[...]                                 # (L, B, H)
  aw_lb = jnp.transpose(attn_w)                      # (L, B)
  attn_applied = jnp.sum(aw_lb[:, :, None] * enc, axis=0)

  # lstm input = attn_combine(cat(embedded, attn_applied))            (B, I)
  lstm_in = (eo[:, ce_s - ae_s:ce_s - ae_s + I]
             + jnp.dot(attn_applied, w_h("comb_a"), preferred_element_type=f32)
             + bias("b_comb"))

  # single LSTM step (num_lstms == 1); PyTorch gate order i, f, g, o
  gates = (ho[:, hh_s - ah_s:hh_s - ah_s + 4 * H]
           + jnp.dot(lstm_in, w_i("w_ih"), preferred_element_type=f32)
           + bias("b_gates"))                        # b_gates = b_ih + b_hh
  i_g = jax.nn.sigmoid(gates[:, 0 * H:1 * H])
  f_g = jax.nn.sigmoid(gates[:, 1 * H:2 * H])
  g_g = jnp.tanh(gates[:, 2 * H:3 * H])
  o_g = jax.nn.sigmoid(gates[:, 3 * H:4 * H])
  c_new = f_g * c0 + i_g * g_g
  h_new = o_g * jnp.tanh(c_new)

  # MLP head: Linear+ReLU, (Dropout -> identity in eval), Linear+ReLU,
  # Linear+ReLU, Linear
  y = jnp.maximum(jnp.dot(h_new, w_h("w1"), preferred_element_type=f32) + bias("b1"), 0.0)
  y = jnp.maximum(jnp.dot(y, w_h("w2"), preferred_element_type=f32) + bias("b2"), 0.0)
  y = jnp.maximum(jnp.dot(y, w_h("w3"), preferred_element_type=f32) + bias("b3"), 0.0)
  out = jnp.dot(y, w_h("w4"), preferred_element_type=f32) + bias("b4")

  # Single lane-dense output slab: [out | h_new | c_new | zero-pad]   (B, 128)
  pad = out_ref.shape[-1] - (I + 2 * H)
  pieces = [out, h_new, c_new]
  if pad > 0:
    pieces.append(jnp.zeros((B, pad), f32))
  out_ref[...] = jnp.concatenate(pieces, axis=-1)


# -----------------------------------------------------------------------------
# One-time parameter packing (hoisted out of the per-call path).
# -----------------------------------------------------------------------------
def prepare_decoder_params(p, input_size, hidden_dim, max_len):
  I, H, L = input_size, hidden_dim, max_len
  (wi_l, wi_n), (wh_l, wh_n), (b_l, b_n) = _layout(I, H, L)
  f32 = jnp.float32

  def put(slab, lay, name, mat):
    s, w = lay[name]
    return slab.at[:, s:s + w].set(mat.astype(f32))

  wi = jnp.zeros((I, wi_n), f32)
  wi = put(wi, wi_l, "w_emb", p["w_emb"].T)
  wi = put(wi, wi_l, "w_ih", p["w_ih"].T)

  wh = jnp.zeros((H, wh_n), f32)
  wh = put(wh, wh_l, "attn_e", p["w_attn"][:, :H].T)
  wh = put(wh, wh_l, "comb_e", p["w_comb"][:, :H].T)
  wh = put(wh, wh_l, "attn_h", p["w_attn"][:, H:].T)
  wh = put(wh, wh_l, "w_hh", p["w_hh"].T)
  wh = put(wh, wh_l, "comb_a", p["w_comb"][:, H:].T)
  wh = put(wh, wh_l, "w1", p["w1"].T)
  wh = put(wh, wh_l, "w2", p["w2"].T)
  wh = put(wh, wh_l, "w3", p["w3"].T)
  wh = put(wh, wh_l, "w4", p["w4"].T)

  b = jnp.zeros((1, b_n), f32)
  b = put(b, b_l, "b_emb", p["b_emb"][None, :])
  b = put(b, b_l, "b_attn", p["b_attn"][None, :])
  b = put(b, b_l, "b_comb", p["b_comb"][None, :])
  b = put(b, b_l, "b_gates", (p["b_ih"] + p["b_hh"])[None, :])
  b = put(b, b_l, "b1", p["b1"][None, :])
  b = put(b, b_l, "b2", p["b2"][None, :])
  b = put(b, b_l, "b3", p["b3"][None, :])
  b = put(b, b_l, "b4", p["b4"][None, :])

  return {"wi": jax.device_put(wi), "wh": jax.device_put(wh),
          "bias": jax.device_put(b), "dims": (I, H, L)}


# -----------------------------------------------------------------------------
# Per-call wrapper: only activation handling; no parameter transposes.
# -----------------------------------------------------------------------------
def decoder_forward(x, hidden, encoder_output, packed):
  """x: (1, B, I); hidden = (h0, c0) each (1, B, H); encoder_output: (L, B, H)."""
  # TODO(synk): the `encoder_output.size()[0] != max_len` zero-padding branch and
  # the use_attention=False branch are not exercised by this configuration.
  # TODO(synk): for autoregressive decode, fuse the step loop into the kernel
  # (grid over steps, weights resident in VMEM, h/c carried via scratch +
  # input_output_aliases) to amortize weight DMAs across the whole sequence.
  I, H, L = packed["dims"]
  B = x.shape[1]
  out_w = _round_up(I + 2 * H)

  slab = pl.pallas_call(
      decoder_kernel,
      out_shape=jax.ShapeDtypeStruct((B, out_w), jnp.float32),
      in_specs=[pl.BlockSpec(memory_space=pltpu.MemorySpace.VMEM)] * 7,
      out_specs=pl.BlockSpec(memory_space=pltpu.MemorySpace.VMEM),
  )(x[0], hidden[0][0], hidden[1][0], encoder_output,
    packed["wi"], packed["wh"], packed["bias"])

  out = slab[:, :I]
  h_new = slab[:, I:I + H]
  c_new = slab[:, I + H:I + 2 * H]
  return out[None], (h_new[None], c_new[None])


# -----------------------------------------------------------------------------
# Pure-JAX reference (mirrors the PyTorch forward exactly) for verification.
# -----------------------------------------------------------------------------
def decoder_ref(x, hidden, enc, p):
  h0, c0 = hidden[0][0], hidden[1][0]
  H = h0.shape[-1]
  emb = x[0] @ p["w_emb"].T + p["b_emb"]
  cat1 = jnp.concatenate([emb, h0], axis=1)
  aw = jax.nn.softmax(cat1 @ p["w_attn"].T + p["b_attn"], axis=1)
  attn_applied = jnp.einsum("bl,lbh->bh", aw, enc)
  cat2 = jnp.concatenate([emb, attn_applied], axis=1)
  lstm_in = cat2 @ p["w_comb"].T + p["b_comb"]
  gates = lstm_in @ p["w_ih"].T + p["b_ih"] + h0 @ p["w_hh"].T + p["b_hh"]
  i = jax.nn.sigmoid(gates[:, :H]); f = jax.nn.sigmoid(gates[:, H:2 * H])
  g = jnp.tanh(gates[:, 2 * H:3 * H]); o = jax.nn.sigmoid(gates[:, 3 * H:])
  c = f * c0 + i * g
  h = o * jnp.tanh(c)
  y = jax.nn.relu(h @ p["w1"].T + p["b1"])
  y = jax.nn.relu(y @ p["w2"].T + p["b2"])
  y = jax.nn.relu(y @ p["w3"].T + p["b3"])
  out = y @ p["w4"].T + p["b4"]
  return out[None], (h[None], c[None])


def init_params(key, input_size, hidden_dim, max_len):
  """Deterministic synthetic init, PyTorch-shaped weights."""
  H, I, L = hidden_dim, input_size, max_len
  shapes = {
      "w_emb": (H, I), "b_emb": (H,),
      "w_attn": (L, 2 * H), "b_attn": (L,),
      "w_comb": (I, 2 * H), "b_comb": (I,),
      "w_ih": (4 * H, I), "b_ih": (4 * H,),
      "w_hh": (4 * H, H), "b_hh": (4 * H,),
      "w1": (H, H), "b1": (H,),
      "w2": (H, H), "b2": (H,),
      "w3": (H, H), "b3": (H,),
      "w4": (I, H), "b4": (I,),
  }
  params = {}
  k = 1.0 / np.sqrt(H)
  keys = jax.random.split(key, len(shapes))
  for sub, (name, shp) in zip(keys, sorted(shapes.items())):
    params[name] = jax.random.uniform(sub, shp, jnp.float32, minval=-k, maxval=k)
  return params


if __name__ == "__main__":
  INPUT_SIZE, HIDDEN, NUM_LSTMS, MAX_LEN, BATCH = 16, 32, 1, 8, 2

  root = jax.random.PRNGKey(0)
  k_p, k_x, k_e, k_h, k_c = jax.random.split(root, 5)
  params = init_params(k_p, INPUT_SIZE, HIDDEN, MAX_LEN)
  packed = prepare_decoder_params(params, INPUT_SIZE, HIDDEN, MAX_LEN)  # one-time

  x = jax.random.normal(k_x, (1, BATCH, INPUT_SIZE), jnp.float32)       # decoder step
  encoder_output = jax.random.normal(k_e, (MAX_LEN, BATCH, HIDDEN), jnp.float32)
  h0 = jax.random.normal(k_h, (NUM_LSTMS, BATCH, HIDDEN), jnp.float32)
  c0 = jax.random.normal(k_c, (NUM_LSTMS, BATCH, HIDDEN), jnp.float32)
  hidden = (h0, c0)

  out, (h_new, c_new) = decoder_forward(x, hidden, encoder_output, packed)
  jax.block_until_ready((out, h_new, c_new))

  ref_out, (ref_h, ref_c) = decoder_ref(x, hidden, encoder_output, params)
  np.testing.assert_allclose(np.asarray(out), np.asarray(ref_out), atol=1e-5, rtol=1e-5)
  np.testing.assert_allclose(np.asarray(h_new), np.asarray(ref_h), atol=1e-5, rtol=1e-5)
  np.testing.assert_allclose(np.asarray(c_new), np.asarray(ref_c), atol=1e-5, rtol=1e-5)

  print("KERNEL_OK")
</pallas_src>

<mosaic_0001>
module attributes {stable_mosaic.version = 11 : i64} {
  func.func @decoder_kernel(%arg0: memref<2x16xf32, #tpu.memory_space<vmem>>, %arg1: memref<2x32xf32, #tpu.memory_space<vmem>>, %arg2: memref<2x32xf32, #tpu.memory_space<vmem>>, %arg3: memref<8x2x32xf32, #tpu.memory_space<vmem>>, %arg4: memref<16x256xf32, #tpu.memory_space<vmem>>, %arg5: memref<32x1152xf32, #tpu.memory_space<vmem>>, %arg6: memref<1x1024xf32, #tpu.memory_space<vmem>>, %arg7: memref<2x128xf32, #tpu.memory_space<vmem>>) attributes {dimension_semantics = [], scalar_prefetch = 0 : i64, scratch_operands = 0 : i64, tpu.core_type = #tpu.core_type<tc>} {
    %c0 = arith.constant 0 : index
    %c0_0 = arith.constant 0 : index
    %0 = vector.load %arg0[%c0, %c0_0] : memref<2x16xf32, #tpu.memory_space<vmem>>, vector<2x16xf32>
    %c0_1 = arith.constant 0 : index
    %c0_2 = arith.constant 0 : index
    %1 = vector.load %arg1[%c0_1, %c0_2] : memref<2x32xf32, #tpu.memory_space<vmem>>, vector<2x32xf32>
    %c0_3 = arith.constant 0 : index
    %c0_4 = arith.constant 0 : index
    %2 = vector.load %arg2[%c0_3, %c0_4] : memref<2x32xf32, #tpu.memory_space<vmem>>, vector<2x32xf32>
    %c0_5 = arith.constant 0 : index
    %c0_6 = arith.constant 0 : index
    %3 = vector.load %arg4[%c0_5, %c0_6] : memref<16x256xf32, #tpu.memory_space<vmem>>, vector<16x32xf32>
    %cst = arith.constant dense<0.000000e+00> : vector<2x32xf32>
    %4 = tpu.matmul %0, %3, %cst {dimension_numbers = #tpu.dot_dimension_numbers<[1], [0], [0], [1], [0, 0, 1, 1], [], []>} : vector<2x16xf32>, vector<16x32xf32>, vector<2x32xf32> -> vector<2x32xf32>
    %c0_7 = arith.constant 0 : index
    %c0_8 = arith.constant 0 : index
    %5 = vector.load %arg6[%c0_7, %c0_8] : memref<1x1024xf32, #tpu.memory_space<vmem>>, vector<1x32xf32>
    %6 = vector.broadcast %5 : vector<1x32xf32> to vector<2x32xf32>
    %7 = arith.addf %4, %6 : vector<2x32xf32>
    %c0_9 = arith.constant 0 : index
    %c0_10 = arith.constant 0 : index
    %8 = vector.load %arg5[%c0_9, %c0_10] : memref<32x1152xf32, #tpu.memory_space<vmem>>, vector<32x144xf32>
    %cst_11 = arith.constant dense<0.000000e+00> : vector<2x144xf32>
    %9 = tpu.matmul %7, %8, %cst_11 {dimension_numbers = #tpu.dot_dimension_numbers<[1], [0], [0], [1], [0, 0, 1, 1], [], []>} : vector<2x32xf32>, vector<32x144xf32>, vector<2x144xf32> -> vector<2x144xf32>
    %c0_12 = arith.constant 0 : index
    %c256 = arith.constant 256 : index
    %10 = vector.load %arg5[%c0_12, %c256] : memref<32x1152xf32, #tpu.memory_space<vmem>>, vector<32x256xf32>
    %cst_13 = arith.constant dense<0.000000e+00> : vector<2x256xf32>
    %11 = tpu.matmul %1, %10, %cst_13 {dimension_numbers = #tpu.dot_dimension_numbers<[1], [0], [0], [1], [0, 0, 1, 1], [], []>} : vector<2x32xf32>, vector<32x256xf32>, vector<2x256xf32> -> vector<2x256xf32>
    %12 = vector.extract_strided_slice %9 {offsets = [0, 0], sizes = [2, 8], strides = [1, 1]} : vector<2x144xf32> to vector<2x8xf32>
    %13 = vector.extract_strided_slice %11 {offsets = [0, 0], sizes = [2, 8], strides = [1, 1]} : vector<2x256xf32> to vector<2x8xf32>
    %14 = arith.addf %12, %13 : vector<2x8xf32>
    %c0_14 = arith.constant 0 : index
    %c128 = arith.constant 128 : index
    %15 = vector.load %arg6[%c0_14, %c128] : memref<1x1024xf32, #tpu.memory_space<vmem>>, vector<1x8xf32>
    %16 = vector.broadcast %15 : vector<1x8xf32> to vector<2x8xf32>
    %17 = arith.addf %14, %16 : vector<2x8xf32>
    %cst_15 = arith.constant dense<0xFF800000> : vector<2xf32>
    %18 = vector.multi_reduction <maximumf>, %17, %cst_15 [1] : vector<2x8xf32> to vector<2xf32>
    %19 = vector.shape_cast %18 : vector<2xf32> to vector<2x1xf32>
    %20 = vector.broadcast %19 : vector<2x1xf32> to vector<2x8xf32>
    %21 = arith.subf %17, %20 : vector<2x8xf32>
    %22 = math.exp %21 : vector<2x8xf32>
    %cst_16 = arith.constant dense<0.000000e+00> : vector<2xf32>
    %23 = vector.multi_reduction <add>, %22, %cst_16 [1] : vector<2x8xf32> to vector<2xf32>
    %24 = vector.shape_cast %23 : vector<2xf32> to vector<2x1xf32>
    %25 = vector.broadcast %24 : vector<2x1xf32> to vector<2x8xf32>
    %26 = arith.divf %22, %25 : vector<2x8xf32>
    %c0_17 = arith.constant 0 : index
    %c0_18 = arith.constant 0 : index
    %c0_19 = arith.constant 0 : index
    %27 = vector.load %arg3[%c0_17, %c0_18, %c0_19] : memref<8x2x32xf32, #tpu.memory_space<vmem>>, vector<8x2x32xf32>
    %28 = tpu.transpose %26, [1, 0] : vector<2x8xf32> -> vector<8x2xf32>
    %29 = vector.shape_cast %28 : vector<8x2xf32> to vector<8x2x1xf32>
    %30 = vector.broadcast %29 : vector<8x2x1xf32> to vector<8x2x32xf32>
    %31 = arith.mulf %30, %27 : vector<8x2x32xf32>
    %cst_20 = arith.constant dense<0.000000e+00> : vector<2x32xf32>
    %32 = vector.multi_reduction <add>, %31, %cst_20 [0] : vector<8x2x32xf32> to vector<2x32xf32>
    %33 = vector.extract_strided_slice %9 {offsets = [0, 128], sizes = [2, 16], strides = [1, 1]} : vector<2x144xf32> to vector<2x16xf32>
    %c0_21 = arith.constant 0 : index
    %c512 = arith.constant 512 : index
    %34 = vector.load %arg5[%c0_21, %c512] : memref<32x1152xf32, #tpu.memory_space<vmem>>, vector<32x16xf32>
    %cst_22 = arith.constant dense<0.000000e+00> : vector<2x16xf32>
    %35 = tpu.matmul %32, %34, %cst_22 {dimension_numbers = #tpu.dot_dimension_numbers<[1], [0], [0], [1], [0, 0, 1, 1], [], []>} : vector<2x32xf32>, vector<32x16xf32>, vector<2x16xf32> -> vector<2x16xf32>
    %36 = arith.addf %33, %35 : vector<2x16xf32>
    %c0_23 = arith.constant 0 : index
    %c256_24 = arith.constant 256 : index
    %37 = vector.load %arg6[%c0_23, %c256_24] : memref<1x1024xf32, #tpu.memory_space<vmem>>, vector<1x16xf32>
    %38 = vector.broadcast %37 : vector<1x16xf32> to vector<2x16xf32>
    %39 = arith.addf %36, %38 : vector<2x16xf32>
    %40 = vector.extract_strided_slice %11 {offsets = [0, 128], sizes = [2, 128], strides = [1, 1]} : vector<2x256xf32> to vector<2x128xf32>
    %c0_25 = arith.constant 0 : index
    %c128_26 = arith.constant 128 : index
    %41 = vector.load %arg4[%c0_25, %c128_26] : memref<16x256xf32, #tpu.memory_space<vmem>>, vector<16x128xf32>
    %cst_27 = arith.constant dense<0.000000e+00> : vector<2x128xf32>
    %42 = tpu.matmul %39, %41, %cst_27 {dimension_numbers = #tpu.dot_dimension_numbers<[1], [0], [0], [1], [0, 0, 1, 1], [], []>} : vector<2x16xf32>, vector<16x128xf32>, vector<2x128xf32> -> vector<2x128xf32>
    %43 = arith.addf %40, %42 : vector<2x128xf32>
    %c0_28 = arith.constant 0 : index
    %c384 = arith.constant 384 : index
    %44 = vector.load %arg6[%c0_28, %c384] : memref<1x1024xf32, #tpu.memory_space<vmem>>, vector<1x128xf32>
    %45 = vector.broadcast %44 : vector<1x128xf32> to vector<2x128xf32>
    %46 = arith.addf %43, %45 : vector<2x128xf32>
    %47 = vector.extract_strided_slice %46 {offsets = [0, 0], sizes = [2, 32], strides = [1, 1]} : vector<2x128xf32> to vector<2x32xf32>
    %48 = arith.negf %47 : vector<2x32xf32>
    %49 = math.exp %48 : vector<2x32xf32>
    %cst_29 = arith.constant 1.000000e+00 : f32
    %50 = vector.broadcast %cst_29 : f32 to vector<2x32xf32>
    %51 = arith.addf %50, %49 : vector<2x32xf32>
    %52 = arith.divf %50, %51 : vector<2x32xf32>
    %53 = vector.extract_strided_slice %46 {offsets = [0, 32], sizes = [2, 32], strides = [1, 1]} : vector<2x128xf32> to vector<2x32xf32>
    %54 = arith.negf %53 : vector<2x32xf32>
    %55 = math.exp %54 : vector<2x32xf32>
    %cst_30 = arith.constant 1.000000e+00 : f32
    %56 = vector.broadcast %cst_30 : f32 to vector<2x32xf32>
    %57 = arith.addf %56, %55 : vector<2x32xf32>
    %58 = arith.divf %56, %57 : vector<2x32xf32>
    %59 = vector.extract_strided_slice %46 {offsets = [0, 64], sizes = [2, 32], strides = [1, 1]} : vector<2x128xf32> to vector<2x32xf32>
    %60 = math.tanh %59 : vector<2x32xf32>
    %61 = vector.extract_strided_slice %46 {offsets = [0, 96], sizes = [2, 32], strides = [1, 1]} : vector<2x128xf32> to vector<2x32xf32>
    %62 = arith.negf %61 : vector<2x32xf32>
    %63 = math.exp %62 : vector<2x32xf32>
    %cst_31 = arith.constant 1.000000e+00 : f32
    %64 = vector.broadcast %cst_31 : f32 to vector<2x32xf32>
    %65 = arith.addf %64, %63 : vector<2x32xf32>
    %66 = arith.divf %64, %65 : vector<2x32xf32>
    %67 = arith.mulf %58, %2 : vector<2x32xf32>
    %68 = arith.mulf %52, %60 : vector<2x32xf32>
    %69 = arith.addf %67, %68 : vector<2x32xf32>
    %70 = math.tanh %69 : vector<2x32xf32>
    %71 = arith.mulf %66, %70 : vector<2x32xf32>
    %c0_32 = arith.constant 0 : index
    %c640 = arith.constant 640 : index
    %72 = vector.load %arg5[%c0_32, %c640] : memref<32x1152xf32, #tpu.memory_space<vmem>>, vector<32x32xf32>
    %cst_33 = arith.constant dense<0.000000e+00> : vector<2x32xf32>
    %73 = tpu.matmul %71, %72, %cst_33 {dimension_numbers = #tpu.dot_dimension_numbers<[1], [0], [0], [1], [0, 0, 1, 1], [], []>} : vector<2x32xf32>, vector<32x32xf32>, vector<2x32xf32> -> vector<2x32xf32>
    %c0_34 = arith.constant 0 : index
    %c512_35 = arith.constant 512 : index
    %74 = vector.load %arg6[%c0_34, %c512_35] : memref<1x1024xf32, #tpu.memory_space<vmem>>, vector<1x32xf32>
    %75 = vector.broadcast %74 : vector<1x32xf32> to vector<2x32xf32>
    %76 = arith.addf %73, %75 : vector<2x32xf32>
    %cst_36 = arith.constant 0.000000e+00 : f32
    %77 = vector.broadcast %cst_36 : f32 to vector<2x32xf32>
    %78 = arith.maximumf %76, %77 : vector<2x32xf32>
    %c0_37 = arith.constant 0 : index
    %c768 = arith.constant 768 : index
    %79 = vector.load %arg5[%c0_37, %c768] : memref<32x1152xf32, #tpu.memory_space<vmem>>, vector<32x32xf32>
    %cst_38 = arith.constant dense<0.000000e+00> : vector<2x32xf32>
    %80 = tpu.matmul %78, %79, %cst_38 {dimension_numbers = #tpu.dot_dimension_numbers<[1], [0], [0], [1], [0, 0, 1, 1], [], []>} : vector<2x32xf32>, vector<32x32xf32>, vector<2x32xf32> -> vector<2x32xf32>
    %c0_39 = arith.constant 0 : index
    %c640_40 = arith.constant 640 : index
    %81 = vector.load %arg6[%c0_39, %c640_40] : memref<1x1024xf32, #tpu.memory_space<vmem>>, vector<1x32xf32>
    %82 = vector.broadcast %81 : vector<1x32xf32> to vector<2x32xf32>
    %83 = arith.addf %80, %82 : vector<2x32xf32>
    %cst_41 = arith.constant 0.000000e+00 : f32
    %84 = vector.broadcast %cst_41 : f32 to vector<2x32xf32>
    %85 = arith.maximumf %83, %84 : vector<2x32xf32>
    %c0_42 = arith.constant 0 : index
    %c896 = arith.constant 896 : index
    %86 = vector.load %arg5[%c0_42, %c896] : memref<32x1152xf32, #tpu.memory_space<vmem>>, vector<32x32xf32>
    %cst_43 = arith.constant dense<0.000000e+00> : vector<2x32xf32>
    %87 = tpu.matmul %85, %86, %cst_43 {dimension_numbers = #tpu.dot_dimension_numbers<[1], [0], [0], [1], [0, 0, 1, 1], [], []>} : vector<2x32xf32>, vector<32x32xf32>, vector<2x32xf32> -> vector<2x32xf32>
    %c0_44 = arith.constant 0 : index
    %c768_45 = arith.constant 768 : index
    %88 = vector.load %arg6[%c0_44, %c768_45] : memref<1x1024xf32, #tpu.memory_space<vmem>>, vector<1x32xf32>
    %89 = vector.broadcast %88 : vector<1x32xf32> to vector<2x32xf32>
    %90 = arith.addf %87, %89 : vector<2x32xf32>
    %cst_46 = arith.constant 0.000000e+00 : f32
    %91 = vector.broadcast %cst_46 : f32 to vector<2x32xf32>
    %92 = arith.maximumf %90, %91 : vector<2x32xf32>
    %c0_47 = arith.constant 0 : index
    %c1024 = arith.constant 1024 : index
    %93 = vector.load %arg5[%c0_47, %c1024] : memref<32x1152xf32, #tpu.memory_space<vmem>>, vector<32x16xf32>
    %cst_48 = arith.constant dense<0.000000e+00> : vector<2x16xf32>
    %94 = tpu.matmul %92, %93, %cst_48 {dimension_numbers = #tpu.dot_dimension_numbers<[1], [0], [0], [1], [0, 0, 1, 1], [], []>} : vector<2x32xf32>, vector<32x16xf32>, vector<2x16xf32> -> vector<2x16xf32>
    %c0_49 = arith.constant 0 : index
    %c896_50 = arith.constant 896 : index
    %95 = vector.load %arg6[%c0_49, %c896_50] : memref<1x1024xf32, #tpu.memory_space<vmem>>, vector<1x16xf32>
    %96 = vector.broadcast %95 : vector<1x16xf32> to vector<2x16xf32>
    %97 = arith.addf %94, %96 : vector<2x16xf32>
    %cst_51 = arith.constant 0.000000e+00 : f32
    %98 = vector.broadcast %cst_51 : f32 to vector<2x48xf32>
    %99 = tpu.concatenate %97, %71, %69, %98 in 1 : vector<2x16xf32>, vector<2x32xf32>, vector<2x32xf32>, vector<2x48xf32> -> vector<2x128xf32>
    %c0_52 = arith.constant 0 : index
    %c0_53 = arith.constant 0 : index
    %100 = vector.load %arg7[%c0_52, %c0_53] : memref<2x128xf32, #tpu.memory_space<vmem>>, vector<2x128xf32>
    tpu.vector_store %arg7[%c0_52, %c0_53], %99 {strides = array<i32>} : memref<2x128xf32, #tpu.memory_space<vmem>>, vector<2x128xf32>,
    return
  }
}

</mosaic_0001>

<llo_original>
// kernel: tpu_custom_call.1
$region0: #{tpu_custom_call.1}
  #allocation0 [shape = 'u32[]', space=smem, size = 0x4, offset = 0x4, fixed_abs, tag = 'smem constant byte address 0x4 - core index']
  #allocation1 [shape = 'u32[144,128]{1,0:T(1,128)}', space=vmem, size = 0x12000, scoped, tag = 'internal scratch']
  %s0 = inlined_call_operand.hbm [shape: f32[2,16], index: 0, kind: input, shape index: {}]
  %s1 = inlined_call_operand.vmem [shape: f32[2,32], index: 1, kind: input, shape index: {}]
  %s2 = inlined_call_operand.vmem [shape: f32[2,32], index: 2, kind: input, shape index: {}]
  %s3 = inlined_call_operand.hbm [shape: f32[8,2,32], index: 3, kind: input, shape index: {}]
  %s4 = inlined_call_operand.hbm [shape: f32[16,256], index: 4, kind: input, shape index: {}]
  %s5 = inlined_call_operand.hbm [shape: f32[32,1152], index: 5, kind: input, shape index: {}]
  %s6 = inlined_call_operand.vmem [shape: f32[1,1024], index: 6, kind: input, shape index: {}]
  %s7 = inlined_call_operand.hbm [shape: f32[2,128], index: 7, kind: output, shape index: {}]
  %s8 = sld [smem:[#allocation0]]
  $region54: #{tpu_custom_call.1} parent=0
    _
  %s10 = ssub.s32 1, %s8
  %s11 = scalar_select 0, %s10, %s8
  $region1: #{tpu_custom_call.1} parent=0
    #allocation2 [shape = 'u8[1024]{0}', space=vmem, size = 0x400, scoped, tag = 'input window, operand 0, single buffered']
    #allocation3 [shape = 's32[1]{0}', space=sflag, size = 0x4, scoped, tag = 'scoped memory for tpu_custom_call.1']
    #allocation4 [shape = 's32[1]{0}', space=sflag, size = 0x4, scoped, tag = 'scoped memory for tpu_custom_call.1']
    #allocation5 [shape = 'u8[8192]{0}', space=vmem, size = 0x2000, scoped, tag = 'input window, operand 3, single buffered']
    #allocation6 [shape = 's32[1]{0}', space=sflag, size = 0x4, scoped, tag = 'scoped memory for tpu_custom_call.1']
    #allocation7 [shape = 'u8[16384]{0}', space=vmem, size = 0x4000, scoped, tag = 'input window, operand 4, single buffered']
    #allocation8 [shape = 'u8[147456]{0}', space=vmem, size = 0x24000, scoped, tag = 'input window, operand 5, single buffered']
    #allocation9 [shape = 's32[1]{0}', space=sflag, size = 0x4, scoped, tag = 'scoped memory for tpu_custom_call.1']
    #allocation10 [shape = 'u8[1024]{0}', space=vmem, size = 0x400, scoped, tag = 'output window, operand 0, single buffered']
    %12 = vsyncpa [#allocation3], 0
    %13 = vsyncpa [#allocation6], 0
    %14 = vsyncpa [#allocation9], 0
    %15 = vsyncpa [#allocation4], 0
    // Predicated region
    $region2: #{tpu_custom_call.1} parent=1 // pred_check
      _
    $region3: #{tpu_custom_call.1} parent=1 // pred_check_branch
      %17 = sbr.rel (0) target = $region5
    $region4: #{tpu_custom_call.1} parent=1 // pred_region
      %s19 = ssub.s32 32, 32
      %20 = vsyncadd [#allocation3], %s19
      %s22 = sshll.u32 [#allocation2], 4
      %s23 = int_to_ptr.vmem [resolvable:$true] %s22
      %25 = dma.hbm_to_vmem [thread:$0]  %s0, 32, %s23, [#allocation3]
    $region5: #{tpu_custom_call.1} parent=1 // pred_fallthru
      _
    // Predicated region
    $region6: #{tpu_custom_call.1} parent=1 // pred_check
      _
    $region7: #{tpu_custom_call.1} parent=1 // pred_check_branch
      %27 = sbr.rel (0) target = $region9
    $region8: #{tpu_custom_call.1} parent=1 // pred_region
      _
    $region9: #{tpu_custom_call.1} parent=1 // pred_fallthru
      _
    // Predicated region
    $region10: #{tpu_custom_call.1} parent=1 // pred_check
      _
    $region11: #{tpu_custom_call.1} parent=1 // pred_check_branch
      %29 = sbr.rel (0) target = $region13
    $region12: #{tpu_custom_call.1} parent=1 // pred_region
      _
    $region13: #{tpu_custom_call.1} parent=1 // pred_fallthru
      _
    // Predicated region
    $region14: #{tpu_custom_call.1} parent=1 // pred_check
      _
    $region15: #{tpu_custom_call.1} parent=1 // pred_check_branch
      %31 = sbr.rel (0) target = $region17
    $region16: #{tpu_custom_call.1} parent=1 // pred_region
      %s33 = ssub.s32 256, 256
      %34 = vsyncadd [#allocation6], %s33
      %s35 = sshll.u32 [#allocation5], 4
      %s36 = int_to_ptr.vmem [resolvable:$true] %s35
      %41 = dma.hbm_to_vmem [thread:$0]  %s3, 256, %s36, [#allocation6], 32, 32, 2
    $region17: #{tpu_custom_call.1} parent=1 // pred_fallthru
      _
    // Predicated region
    $region18: #{tpu_custom_call.1} parent=1 // pred_check
      _
    $region19: #{tpu_custom_call.1} parent=1 // pred_check_branch
      %43 = sbr.rel (0) target = $region21
    $region20: #{tpu_custom_call.1} parent=1 // pred_region
      %s45 = ssub.s32 512, 512
      %46 = vsyncadd [#allocation6], %s45
      %s47 = sshll.u32 [#allocation7], 4
      %s48 = int_to_ptr.vmem [resolvable:$true] %s47
      %53 = dma.hbm_to_vmem [thread:$0]  %s4, 512, %s48, [#allocation6], 256, 256, 16
    $region21: #{tpu_custom_call.1} parent=1 // pred_fallthru
      _
    // Predicated region
    $region22: #{tpu_custom_call.1} parent=1 // pred_check
      _
    $region23: #{tpu_custom_call.1} parent=1 // pred_check_branch
      %55 = sbr.rel (0) target = $region25
    $region24: #{tpu_custom_call.1} parent=1 // pred_region
      %s57 = ssub.s32 4608, 4608
      %58 = vsyncadd [#allocation9], %s57
      %s59 = sshll.u32 [#allocation8], 4
      %s60 = int_to_ptr.vmem [resolvable:$true] %s59
      %65 = dma.hbm_to_vmem [thread:$0]  %s5, 4608, %s60, [#allocation9], 1152, 1152, 72
    $region25: #{tpu_custom_call.1} parent=1 // pred_fallthru
      _
    // Predicated region
    $region26: #{tpu_custom_call.1} parent=1 // pred_check
      _
    $region27: #{tpu_custom_call.1} parent=1 // pred_check_branch
      %67 = sbr.rel (0) target = $region29
    $region28: #{tpu_custom_call.1} parent=1 // pred_region
      _
    $region29: #{tpu_custom_call.1} parent=1 // pred_fallthru
      _
    // Predicated region
    $region30: #{tpu_custom_call.1} parent=1 // pred_check
      _
    $region31: #{tpu_custom_call.1} parent=1 // pred_check_branch
      %69 = sbr.rel (0) target = $region33
    $region32: #{tpu_custom_call.1} parent=1 // pred_region
      %70 = dma.done [#allocation3], 32
    $region33: #{tpu_custom_call.1} parent=1 // pred_fallthru
      _
    // Predicated region
    $region34: #{tpu_custom_call.1} parent=1 // pred_check
      _
    $region35: #{tpu_custom_call.1} parent=1 // pred_check_branch
      %72 = sbr.rel (0) target = $region37
    $region36: #{tpu_custom_call.1} parent=1 // pred_region
      %73 = dma.done [#allocation6], 256
    $region37: #{tpu_custom_call.1} parent=1 // pred_fallthru
      _
    // Predicated region
    $region38: #{tpu_custom_call.1} parent=1 // pred_check
      _
    $region39: #{tpu_custom_call.1} parent=1 // pred_check_branch
      %75 = sbr.rel (0) target = $region41
    $region40: #{tpu_custom_call.1} parent=1 // pred_region
      %76 = dma.done [#allocation6], 512
    $region41: #{tpu_custom_call.1} parent=1 // pred_fallthru
      _
    // Predicated region
    $region42: #{tpu_custom_call.1} parent=1 // pred_check
      _
    $region43: #{tpu_custom_call.1} parent=1 // pred_check_branch
      %78 = sbr.rel (0) target = $region45
    $region44: #{tpu_custom_call.1} parent=1 // pred_region
      %79 = dma.done [#allocation9], 4608
    $region45: #{tpu_custom_call.1} parent=1 // pred_fallthru
      _
    %v80 = vld [vmem:[#allocation2] sm:$0x3]
    %v81 = vld [vmem:[%s1] sm:$0x3]
    %v82 = vld [vmem:[%s2] sm:$0x3]
    %v83 = vld [vmem:[#allocation7] sm:$0xff]
    %v84 = vld [vmem:[#allocation7 + $0x10] sm:$0xff]
    %v85 = vld [vmem:[%s6] sm:$0x1]
    %v87 = vlaneseq
    %v88 = vshrl.u32 %v87, 7
    %v89 = vsub.s32 0, %v88
    %v90 = vrot.slane %v85, %v89
    %vm92 = vcmask 130048
    %v94 = vsel %vm92, %v80, 0
    %96 = vmatprep.subr.mxu0 0.0
    %97 = vmatpush1.msra.mxu0 %v83
    %98 = vmatprep.subr.mxu0 0.0
    %99 = vmatpush1.msra.mxu0 %v84
    %100 = vmatprep.subr.mxu0 0.0
    %101 = vmatpush1.msra.mxu0 0.0
    %102 = vmatprep.subr.mxu0 0.0
    %103 = vmatpush1.msra.mxu0 0.0
    %104 = vmatprep.subr.mxu0 0.0
    %105 = vmatpush1.msra.mxu0 0.0
    %106 = vmatprep.subr.mxu0 0.0
    %107 = vmatpush1.msra.mxu0 0.0
    %108 = vmatprep.subr.mxu0 0.0
    %109 = vmatpush1.msra.mxu0 0.0
    %110 = vmatprep.subr.mxu0 0.0
    %111 = vmatpush1.msra.mxu0 0.0
    %112 = vmatprep.subr.mxu0 0.0
    %113 = vmatpush1.msra.mxu0 0.0
    %114 = vmatprep.subr.mxu0 0.0
    %115 = vmatpush1.msra.mxu0 0.0
    %116 = vmatprep.subr.mxu0 0.0
    %117 = vmatpush1.msra.mxu0 0.0
    %118 = vmatprep.subr.mxu0 0.0
    %119 = vmatpush1.msra.mxu0 0.0
    %120 = vmatprep.subr.mxu0 0.0
    %121 = vmatpush1.msra.mxu0 0.0
    %122 = vmatprep.subr.mxu0 0.0
    %123 = vmatpush1.msra.mxu0 0.0
    %124 = vmatprep.subr.mxu0 0.0
    %125 = vmatpush1.msra.mxu0 0.0
    %126 = vmatprep.subr.mxu0 0.0
    %127 = vmatpush1.msra.mxu0 0.0
    %128 = vmatprep.subr.mxu0 0.0
    %129 = vmatpush1.msra.mxu0 0.0
    %130 = vmatprep.subr.mxu0 0.0
    %131 = vmatpush1.msra.mxu0 0.0
    %132 = vmatprep.subr.mxu0 0.0
    %133 = vmatpush1.msra.mxu0 0.0
    %134 = vmatprep.subr.mxu0 0.0
    %135 = vmatpush1.msra.mxu0 0.0
    %136 = vmatprep.subr.mxu0 0.0
    %137 = vmatpush1.msra.mxu0 0.0
    %138 = vmatprep.subr.mxu0 0.0
    %139 = vmatpush1.msra.mxu0 0.0
    %140 = vmatprep.subr.mxu0 0.0
    %141 = vmatpush1.msra.mxu0 0.0
    %142 = vmatprep.subr.mxu0 0.0
    %143 = vmatpush1.msra.mxu0 0.0
    %144 = vmatprep.subr.mxu0 0.0
    %145 = vmatpush1.msra.mxu0 0.0
    %146 = vmatprep.subr.mxu0 0.0
    %147 = vmatpush1.msra.mxu0 0.0
    %148 = vmatprep.subr.mxu0 0.0
    %149 = vmatpush1.msra.mxu0 0.0
    %150 = vmatprep.subr.mxu0 0.0
    %151 = vmatpush1.msra.mxu0 0.0
    %152 = vmatprep.subr.mxu0 0.0
    %153 = vmatpush1.msra.mxu0 0.0
    %154 = vmatprep.subr.mxu0 0.0
    %155 = vmatpush1.msra.mxu0 0.0
    %156 = vmatprep.subr.mxu0 0.0
    %157 = vmatpush1.msra.mxu0 0.0
    %158 = vmatprep.subr.mxu0 0.0
    %159 = vmatpush1.msra.mxu0 0.0
    %160 = vmatprep.mubr.f32.mxu0 0.0
    %161 = vmatmul.mubr.f32.gmra.mrb[0].mxu0 %v94
    %v162 = vpop.f32.mrb[0].mxu0
    %v163 = vadd.f32 %v90, %v162
    %v164 = vpop.f32.mrb[0].mxu0
    %165 = vdwg.mxu0
    %v166 = vld [vmem:[#allocation8] sm:$0xff]
    %v167 = vld [vmem:[#allocation8 + $0x8] sm:$0xff]
    %v168 = vld [vmem:[#allocation8 + $0x48] sm:$0xff]
    %v169 = vld [vmem:[#allocation8 + $0x50] sm:$0xff]
    %v170 = vld [vmem:[#allocation8 + $0x90] sm:$0xff]
    %v171 = vld [vmem:[#allocation8 + $0x98] sm:$0xff]
    %v172 = vld [vmem:[#allocation8 + $0xd8] sm:$0xff]
    %v173 = vld [vmem:[#allocation8 + $0xe0] sm:$0xff]
    %vm174 = vcmask 261120
    %v176 = vsel %vm174, %v163, 0
    %178 = vmatprep.subr.mxu0 %v167
    %179 = vmatpush1.msra.mxu0 %v166
    %180 = vmatprep.subr.mxu0 %v169
    %181 = vmatpush1.msra.mxu0 %v168
    %182 = vmatprep.subr.mxu0 %v171
    %183 = vmatpush1.msra.mxu0 %v170
    %184 = vmatprep.subr.mxu0 %v173
    %185 = vmatpush1.msra.mxu0 %v172
    %186 = vmatprep.subr.mxu0 0.0
    %187 = vmatpush1.msra.mxu0 0.0
    %188 = vmatprep.subr.mxu0 0.0
    %189 = vmatpush1.msra.mxu0 0.0
    %190 = vmatprep.subr.mxu0 0.0
    %191 = vmatpush1.msra.mxu0 0.0
    %192 = vmatprep.subr.mxu0 0.0
    %193 = vmatpush1.msra.mxu0 0.0
    %194 = vmatprep.subr.mxu0 0.0
    %195 = vmatpush1.msra.mxu0 0.0
    %196 = vmatprep.subr.mxu0 0.0
    %197 = vmatpush1.msra.mxu0 0.0
    %198 = vmatprep.subr.mxu0 0.0
    %199 = vmatpush1.msra.mxu0 0.0
    %200 = vmatprep.subr.mxu0 0.0
    %201 = vmatpush1.msra.mxu0 0.0
    %202 = vmatprep.subr.mxu0 0.0
    %203 = vmatpush1.msra.mxu0 0.0
    %204 = vmatprep.subr.mxu0 0.0
    %205 = vmatpush1.msra.mxu0 0.0
    %206 = vmatprep.subr.mxu0 0.0
    %207 = vmatpush1.msra.mxu0 0.0
    %208 = vmatprep.subr.mxu0 0.0
    %209 = vmatpush1.msra.mxu0 0.0
    %210 = vmatprep.subr.mxu0 0.0
    %211 = vmatpush1.msra.mxu0 0.0
    %212 = vmatprep.subr.mxu0 0.0
    %213 = vmatpush1.msra.mxu0 0.0
    %214 = vmatprep.subr.mxu0 0.0
    %215 = vmatpush1.msra.mxu0 0.0
    %216 = vmatprep.subr.mxu0 0.0
    %217 = vmatpush1.msra.mxu0 0.0
    %218 = vmatprep.subr.mxu0 0.0
    %219 = vmatpush1.msra.mxu0 0.0
    %220 = vmatprep.subr.mxu0 0.0
    %221 = vmatpush1.msra.mxu0 0.0
    %222 = vmatprep.subr.mxu0 0.0
    %223 = vmatpush1.msra.mxu0 0.0
    %224 = vmatprep.subr.mxu0 0.0
    %225 = vmatpush1.msra.mxu0 0.0
    %226 = vmatprep.subr.mxu0 0.0
    %227 = vmatpush1.msra.mxu0 0.0
    %228 = vmatprep.subr.mxu0 0.0
    %229 = vmatpush1.msra.mxu0 0.0
    %230 = vmatprep.subr.mxu0 0.0
    %231 = vmatpush1.msra.mxu0 0.0
    %232 = vmatprep.subr.mxu0 0.0
    %233 = vmatpush1.msra.mxu0 0.0
    %234 = vmatprep.subr.mxu0 0.0
    %235 = vmatpush1.msra.mxu0 0.0
    %236 = vmatprep.subr.mxu0 0.0
    %237 = vmatpush1.msra.mxu0 0.0
    %238 = vmatprep.subr.mxu0 0.0
    %239 = vmatpush1.msra.mxu0 0.0
    %240 = vmatprep.subr.mxu0 0.0
    %241 = vmatpush1.msra.mxu0 0.0
    %242 = vmatprep.mubr.f32.mxu0 0.0
    %243 = vmatmul.mubr.f32.gmra.mrb[0].mxu0 %v176
    %v244 = vpop.f32.mrb[0].mxu0
    %v245 = vadd.f32 0.0, %v244
    %v246 = vpop.f32.mrb[0].mxu0
    %v247 = vadd.f32 0.0, %v246
    %248 = vdwg.mxu0
    %v249 = vld [vmem:[#allocation8 + $0x10] sm:$0xff]
    %v250 = vld [vmem:[#allocation8 + $0x18] sm:$0xff]
    %v251 = vld [vmem:[#allocation8 + $0x58] sm:$0xff]
    %v252 = vld [vmem:[#allocation8 + $0x60] sm:$0xff]
    %v253 = vld [vmem:[#allocation8 + $0xa0] sm:$0xff]
    %v254 = vld [vmem:[#allocation8 + $0xa8] sm:$0xff]
    %v255 = vld [vmem:[#allocation8 + $0xe8] sm:$0xff]
    %v256 = vld [vmem:[#allocation8 + $0xf0] sm:$0xff]
    %v258 = vsel %vm174, %v81, 0
    %260 = vmatprep.subr.mxu0 %v250
    %261 = vmatpush1.msra.mxu0 %v249
    %262 = vmatprep.subr.mxu0 %v252
    %263 = vmatpush1.msra.mxu0 %v251
    %264 = vmatprep.subr.mxu0 %v254
    %265 = vmatpush1.msra.mxu0 %v253
    %266 = vmatprep.subr.mxu0 %v256
    %267 = vmatpush1.msra.mxu0 %v255
    %268 = vmatprep.subr.mxu0 0.0
    %269 = vmatpush1.msra.mxu0 0.0
    %270 = vmatprep.subr.mxu0 0.0
    %271 = vmatpush1.msra.mxu0 0.0
    %272 = vmatprep.subr.mxu0 0.0
    %273 = vmatpush1.msra.mxu0 0.0
    %274 = vmatprep.subr.mxu0 0.0
    %275 = vmatpush1.msra.mxu0 0.0
    %276 = vmatprep.subr.mxu0 0.0
    %277 = vmatpush1.msra.mxu0 0.0
    %278 = vmatprep.subr.mxu0 0.0
    %279 = vmatpush1.msra.mxu0 0.0
    %280 = vmatprep.subr.mxu0 0.0
    %281 = vmatpush1.msra.mxu0 0.0
    %282 = vmatprep.subr.mxu0 0.0
    %283 = vmatpush1.msra.mxu0 0.0
    %284 = vmatprep.subr.mxu0 0.0
    %285 = vmatpush1.msra.mxu0 0.0
    %286 = vmatprep.subr.mxu0 0.0
    %287 = vmatpush1.msra.mxu0 0.0
    %288 = vmatprep.subr.mxu0 0.0
    %289 = vmatpush1.msra.mxu0 0.0
    %290 = vmatprep.subr.mxu0 0.0
    %291 = vmatpush1.msra.mxu0 0.0
    %292 = vmatprep.subr.mxu0 0.0
    %293 = vmatpush1.msra.mxu0 0.0
    %294 = vmatprep.subr.mxu0 0.0
    %295 = vmatpush1.msra.mxu0 0.0
    %296 = vmatprep.subr.mxu0 0.0
    %297 = vmatpush1.msra.mxu0 0.0
    %298 = vmatprep.subr.mxu0 0.0
    %299 = vmatpush1.msra.mxu0 0.0
    %300 = vmatprep.subr.mxu0 0.0
    %301 = vmatpush1.msra.mxu0 0.0
    %302 = vmatprep.subr.mxu0 0.0
    %303 = vmatpush1.msra.mxu0 0.0
    %304 = vmatprep.subr.mxu0 0.0
    %305 = vmatpush1.msra.mxu0 0.0
    %306 = vmatprep.subr.mxu0 0.0
    %307 = vmatpush1.msra.mxu0 0.0
    %308 = vmatprep.subr.mxu0 0.0
    %309 = vmatpush1.msra.mxu0 0.0
    %310 = vmatprep.subr.mxu0 0.0
    %311 = vmatpush1.msra.mxu0 0.0
    %312 = vmatprep.subr.mxu0 0.0
    %313 = vmatpush1.msra.mxu0 0.0
    %314 = vmatprep.subr.mxu0 0.0
    %315 = vmatpush1.msra.mxu0 0.0
    %316 = vmatprep.subr.mxu0 0.0
    %317 = vmatpush1.msra.mxu0 0.0
    %318 = vmatprep.subr.mxu0 0.0
    %319 = vmatpush1.msra.mxu0 0.0
    %320 = vmatprep.subr.mxu0 0.0
    %321 = vmatpush1.msra.mxu0 0.0
    %322 = vmatprep.subr.mxu0 0.0
    %323 = vmatpush1.msra.mxu0 0.0
    %324 = vmatprep.mubr.f32.mxu0 0.0
    %325 = vmatmul.mubr.f32.gmra.mrb[0].mxu0 %v258
    %v326 = vpop.f32.mrb[0].mxu0
    %v327 = vadd.f32 0.0, %v326
    %v328 = vpop.f32.mrb[0].mxu0
    %v329 = vadd.f32 0.0, %v328
    %330 = vdwg.mxu0
    %v331 = vadd.f32 %v245, %v327
    %v332 = vld [vmem:[%s6 + $0x1] sm:$0x1]
    %v334 = vlaneseq
    %v335 = vshrl.u32 %v334, 7
    %v336 = vsub.s32 0, %v335
    %v337 = vrot.slane %v332, %v336
    %v339 = vadd.f32 %v331, %v337
    %vm340 = vcmask 58368
    %v341 = vsel %vm340, %v339, -inf
    %342 = vmax.xlane.f32.xlu0 %v341
    %v343 = vpop.xlane.xlu0 %342
    %v344 = vsub.f32 %v339, %v343
    %v345 = vmul.f32 %v344, 1.442695
    %v346 = vpow.pop %v345
    %v347 = vsel %vm340, %v346, 0.0
    %348 = vadd.xlane.f32.xlu0 %v347
    %v349 = vpop.xlane.xlu0 %348
    %v350 = vrcp.pop %v349
    %v351 = vmul.f32 %v346, %v350
    %v352 = vld [vmem:[#allocation5] sm:$0x3]
    %v353 = vld [vmem:[#allocation5 + $0x2] sm:$0x3]
    %v354 = vld [vmem:[#allocation5 + $0x4] sm:$0x3]
    %v355 = vld [vmem:[#allocation5 + $0x6] sm:$0x3]
    %v356 = vld [vmem:[#allocation5 + $0x8] sm:$0x3]
    %v357 = vld [vmem:[#allocation5 + $0xa] sm:$0x3]
    %v358 = vld [vmem:[#allocation5 + $0xc] sm:$0x3]
    %v359 = vld [vmem:[#allocation5 + $0xe] sm:$0x3]
    %360 = vxpose.xlu0.b32.start [1/16] %v351, 128
    %361 = vxpose.xlu0.b32.cont [2/16] 0.0, 128
    %362 = vxpose.xlu0.b32.cont [3/16] 0.0, 128
    %363 = vxpose.xlu0.b32.cont [4/16] 0.0, 128
    %364 = vxpose.xlu0.b32.cont [5/16] 0.0, 128
    %365 = vxpose.xlu0.b32.cont [6/16] 0.0, 128
    %366 = vxpose.xlu0.b32.cont [7/16] 0.0, 128
    %367 = vxpose.xlu0.b32.cont [8/16] 0.0, 128
    %368 = vxpose.xlu0.b32.cont [9/16] 0.0, 128
    %369 = vxpose.xlu0.b32.cont [10/16] 0.0, 128
    %370 = vxpose.xlu0.b32.cont [11/16] 0.0, 128
    %371 = vxpose.xlu0.b32.cont [12/16] 0.0, 128
    %372 = vxpose.xlu0.b32.cont [13/16] 0.0, 128
    %373 = vxpose.xlu0.b32.cont [14/16] 0.0, 128
    %374 = vxpose.xlu0.b32.cont [15/16] 0.0, 128
    %375 = vxpose.xlu0.b32.end [16/16] 0.0, 128
    %v376 = vpop.trf.xlu0
    %v377 = vpop.trf.xlu0
    %v378 = vpop.trf.xlu0
    %v379 = vpop.trf.xlu0
    %v380 = vpop.trf.xlu0
    %v381 = vpop.trf.xlu0
    %v382 = vpop.trf.xlu0
    %v383 = vpop.trf.xlu0
    %v384 = vpop.trf.xlu0
    %v385 = vpop.trf.xlu0
    %v386 = vpop.trf.xlu0
    %v387 = vpop.trf.xlu0
    %v388 = vpop.trf.xlu0
    %v389 = vpop.trf.xlu0
    %v390 = vpop.trf.xlu0
    %v391 = vpop.trf.xlu0
    %v392 = vlaneseq
    %v393 = vshrl.u32 %v392, 7
    %v394 = vsub.s32 0, %v393
    %v395 = vrot.slane %v376, %v394
    %397 = vbcast.lane.b32.xlu0 %v395, 256
    %v398 = vpop.permute.xlu0 %397
    %v399 = vlaneseq
    %v400 = vshrl.u32 %v399, 7
    %v401 = vsub.s32 1, %v400
    %v402 = vrot.slane %v376, %v401
    %404 = vbcast.lane.b32.xlu0 %v402, 256
    %v405 = vpop.permute.xlu0 %404
    %v406 = vlaneseq
    %v407 = vshrl.u32 %v406, 7
    %v408 = vsub.s32 2, %v407
    %v409 = vrot.slane %v376, %v408
    %411 = vbcast.lane.b32.xlu0 %v409, 256
    %v412 = vpop.permute.xlu0 %411
    %v413 = vlaneseq
    %v414 = vshrl.u32 %v413, 7
    %v415 = vsub.s32 3, %v414
    %v416 = vrot.slane %v376, %v415
    %418 = vbcast.lane.b32.xlu0 %v416, 256
    %v419 = vpop.permute.xlu0 %418
    %v420 = vlaneseq
    %v421 = vshrl.u32 %v420, 7
    %v422 = vsub.s32 4, %v421
    %v423 = vrot.slane %v376, %v422
    %425 = vbcast.lane.b32.xlu0 %v423, 256
    %v426 = vpop.permute.xlu0 %425
    %v427 = vlaneseq
    %v428 = vshrl.u32 %v427, 7
    %v429 = vsub.s32 5, %v428
    %v430 = vrot.slane %v376, %v429
    %432 = vbcast.lane.b32.xlu0 %v430, 256
    %v433 = vpop.permute.xlu0 %432
    %v434 = vlaneseq
    %v435 = vshrl.u32 %v434, 7
    %v436 = vsub.s32 6, %v435
    %v437 = vrot.slane %v376, %v436
    %439 = vbcast.lane.b32.xlu0 %v437, 256
    %v440 = vpop.permute.xlu0 %439
    %v441 = vlaneseq
    %v442 = vshrl.u32 %v441, 7
    %v443 = vsub.s32 7, %v442
    %v444 = vrot.slane %v376, %v443
    %446 = vbcast.lane.b32.xlu0 %v444, 256
    %v447 = vpop.permute.xlu0 %446
    %v448 = vmul.f32 %v398, %v352
    %v449 = vmul.f32 %v405, %v353
    %v450 = vmul.f32 %v412, %v354
    %v451 = vmul.f32 %v419, %v355
    %v452 = vmul.f32 %v426, %v356
    %v453 = vmul.f32 %v433, %v357
    %v454 = vmul.f32 %v440, %v358
    %v455 = vmul.f32 %v447, %v359
    %vm456 = vcmask 254976
    %v457 = vsel %vm456, %v448, 0.0
    %v458 = vsel %vm456, %v449, 0.0
    %v459 = vadd.f32 %v457, %v458
    %v460 = vsel %vm456, %v450, 0.0
    %v461 = vadd.f32 %v459, %v460
    %v462 = vsel %vm456, %v451, 0.0
    %v463 = vadd.f32 %v461, %v462
    %v464 = vsel %vm456, %v452, 0.0
    %v465 = vadd.f32 %v463, %v464
    %v466 = vsel %vm456, %v453, 0.0
    %v467 = vadd.f32 %v465, %v466
    %v468 = vsel %vm456, %v454, 0.0
    %v469 = vadd.f32 %v467, %v468
    %v470 = vsel %vm456, %v455, 0.0
    %v471 = vadd.f32 %v469, %v470
    %v472 = vld [vmem:[#allocation8 + $0x20] sm:$0xff]
    %v473 = vld [vmem:[#allocation8 + $0x68] sm:$0xff]
    %v474 = vld [vmem:[#allocation8 + $0xb0] sm:$0xff]
    %v475 = vld [vmem:[#allocation8 + $0xf8] sm:$0xff]
    %v477 = vsel %vm174, %v471, 0
    %479 = vmatprep.subr.mxu0 0.0
    %480 = vmatpush1.msra.mxu0 %v472
    %481 = vmatprep.subr.mxu0 0.0
    %482 = vmatpush1.msra.mxu0 %v473
    %483 = vmatprep.subr.mxu0 0.0
    %484 = vmatpush1.msra.mxu0 %v474
    %485 = vmatprep.subr.mxu0 0.0
    %486 = vmatpush1.msra.mxu0 %v475
    %487 = vmatprep.subr.mxu0 0.0
    %488 = vmatpush1.msra.mxu0 0.0
    %489 = vmatprep.subr.mxu0 0.0
    %490 = vmatpush1.msra.mxu0 0.0
    %491 = vmatprep.subr.mxu0 0.0
    %492 = vmatpush1.msra.mxu0 0.0
    %493 = vmatprep.subr.mxu0 0.0
    %494 = vmatpush1.msra.mxu0 0.0
    %495 = vmatprep.subr.mxu0 0.0
    %496 = vmatpush1.msra.mxu0 0.0
    %497 = vmatprep.subr.mxu0 0.0
    %498 = vmatpush1.msra.mxu0 0.0
    %499 = vmatprep.subr.mxu0 0.0
    %500 = vmatpush1.msra.mxu0 0.0
    %501 = vmatprep.subr.mxu0 0.0
    %502 = vmatpush1.msra.mxu0 0.0
    %503 = vmatprep.subr.mxu0 0.0
    %504 = vmatpush1.msra.mxu0 0.0
    %505 = vmatprep.subr.mxu0 0.0
    %506 = vmatpush1.msra.mxu0 0.0
    %507 = vmatprep.subr.mxu0 0.0
    %508 = vmatpush1.msra.mxu0 0.0
    %509 = vmatprep.subr.mxu0 0.0
    %510 = vmatpush1.msra.mxu0 0.0
    %511 = vmatprep.subr.mxu0 0.0
    %512 = vmatpush1.msra.mxu0 0.0
    %513 = vmatprep.subr.mxu0 0.0
    %514 = vmatpush1.msra.mxu0 0.0
    %515 = vmatprep.subr.mxu0 0.0
    %516 = vmatpush1.msra.mxu0 0.0
    %517 = vmatprep.subr.mxu0 0.0
    %518 = vmatpush1.msra.mxu0 0.0
    %519 = vmatprep.subr.mxu0 0.0
    %520 = vmatpush1.msra.mxu0 0.0
    %521 = vmatprep.subr.mxu0 0.0
    %522 = vmatpush1.msra.mxu0 0.0
    %523 = vmatprep.subr.mxu0 0.0
    %524 = vmatpush1.msra.mxu0 0.0
    %525 = vmatprep.subr.mxu0 0.0
    %526 = vmatpush1.msra.mxu0 0.0
    %527 = vmatprep.subr.mxu0 0.0
    %528 = vmatpush1.msra.mxu0 0.0
    %529 = vmatprep.subr.mxu0 0.0
    %530 = vmatpush1.msra.mxu0 0.0
    %531 = vmatprep.subr.mxu0 0.0
    %532 = vmatpush1.msra.mxu0 0.0
    %533 = vmatprep.subr.mxu0 0.0
    %534 = vmatpush1.msra.mxu0 0.0
    %535 = vmatprep.subr.mxu0 0.0
    %536 = vmatpush1.msra.mxu0 0.0
    %537 = vmatprep.subr.mxu0 0.0
    %538 = vmatpush1.msra.mxu0 0.0
    %539 = vmatprep.subr.mxu0 0.0
    %540 = vmatpush1.msra.mxu0 0.0
    %541 = vmatprep.subr.mxu0 0.0
    %542 = vmatpush1.msra.mxu0 0.0
    %543 = vmatprep.mubr.f32.mxu0 0.0
    %544 = vmatmul.mubr.f32.gmra.mrb[0].mxu0 %v477
    %v545 = vpop.f32.mrb[0].mxu0
    %v546 = vadd.f32 0.0, %v545
    %v547 = vpop.f32.mrb[0].mxu0
    %548 = vdwg.mxu0
    %v549 = vadd.f32 %v247, %v546
    %v550 = vld [vmem:[%s6 + $0x2] sm:$0x1]
    %v552 = vlaneseq
    %v553 = vshrl.u32 %v552, 7
    %v554 = vsub.s32 0, %v553
    %v555 = vrot.slane %v550, %v554
    %v557 = vadd.f32 %v549, %v555
    %v558 = vld [vmem:[#allocation7 + $0x8] sm:$0xff]
    %v559 = vld [vmem:[#allocation7 + $0x18] sm:$0xff]
    %v561 = vsel %vm92, %v557, 0
    %563 = vmatprep.subr.mxu0 0.0
    %564 = vmatpush1.msra.mxu0 %v558
    %565 = vmatprep.subr.mxu0 0.0
    %566 = vmatpush1.msra.mxu0 %v559
    %567 = vmatprep.subr.mxu0 0.0
    %568 = vmatpush1.msra.mxu0 0.0
    %569 = vmatprep.subr.mxu0 0.0
    %570 = vmatpush1.msra.mxu0 0.0
    %571 = vmatprep.subr.mxu0 0.0
    %572 = vmatpush1.msra.mxu0 0.0
    %573 = vmatprep.subr.mxu0 0.0
    %574 = vmatpush1.msra.mxu0 0.0
    %575 = vmatprep.subr.mxu0 0.0
    %576 = vmatpush1.msra.mxu0 0.0
    %577 = vmatprep.subr.mxu0 0.0
    %578 = vmatpush1.msra.mxu0 0.0
    %579 = vmatprep.subr.mxu0 0.0
    %580 = vmatpush1.msra.mxu0 0.0
    %581 = vmatprep.subr.mxu0 0.0
    %582 = vmatpush1.msra.mxu0 0.0
    %583 = vmatprep.subr.mxu0 0.0
    %584 = vmatpush1.msra.mxu0 0.0
    %585 = vmatprep.subr.mxu0 0.0
    %586 = vmatpush1.msra.mxu0 0.0
    %587 = vmatprep.subr.mxu0 0.0
    %588 = vmatpush1.msra.mxu0 0.0
    %589 = vmatprep.subr.mxu0 0.0
    %590 = vmatpush1.msra.mxu0 0.0
    %591 = vmatprep.subr.mxu0 0.0
    %592 = vmatpush1.msra.mxu0 0.0
    %593 = vmatprep.subr.mxu0 0.0
    %594 = vmatpush1.msra.mxu0 0.0
    %595 = vmatprep.subr.mxu0 0.0
    %596 = vmatpush1.msra.mxu0 0.0
    %597 = vmatprep.subr.mxu0 0.0
    %598 = vmatpush1.msra.mxu0 0.0
    %599 = vmatprep.subr.mxu0 0.0
    %600 = vmatpush1.msra.mxu0 0.0
    %601 = vmatprep.subr.mxu0 0.0
    %602 = vmatpush1.msra.mxu0 0.0
    %603 = vmatprep.subr.mxu0 0.0
    %604 = vmatpush1.msra.mxu0 0.0
    %605 = vmatprep.subr.mxu0 0.0
    %606 = vmatpush1.msra.mxu0 0.0
    %607 = vmatprep.subr.mxu0 0.0
    %608 = vmatpush1.msra.mxu0 0.0
    %609 = vmatprep.subr.mxu0 0.0
    %610 = vmatpush1.msra.mxu0 0.0
    %611 = vmatprep.subr.mxu0 0.0
    %612 = vmatpush1.msra.mxu0 0.0
    %613 = vmatprep.subr.mxu0 0.0
    %614 = vmatpush1.msra.mxu0 0.0
    %615 = vmatprep.subr.mxu0 0.0
    %616 = vmatpush1.msra.mxu0 0.0
    %617 = vmatprep.subr.mxu0 0.0
    %618 = vmatpush1.msra.mxu0 0.0
    %619 = vmatprep.subr.mxu0 0.0
    %620 = vmatpush1.msra.mxu0 0.0
    %621 = vmatprep.subr.mxu0 0.0
    %622 = vmatpush1.msra.mxu0 0.0
    %623 = vmatprep.subr.mxu0 0.0
    %624 = vmatpush1.msra.mxu0 0.0
    %625 = vmatprep.subr.mxu0 0.0
    %626 = vmatpush1.msra.mxu0 0.0
    %627 = vmatprep.mubr.f32.mxu0 0.0
    %628 = vmatmul.mubr.f32.gmra.mrb[0].mxu0 %v561
    %v629 = vpop.f32.mrb[0].mxu0
    %v630 = vadd.f32 0.0, %v629
    %v631 = vpop.f32.mrb[0].mxu0
    %632 = vdwg.mxu0
    %v633 = vadd.f32 %v329, %v630
    %v634 = vld [vmem:[%s6 + $0x3] sm:$0x1]
    %v636 = vlaneseq
    %v637 = vshrl.u32 %v636, 7
    %v638 = vsub.s32 0, %v637
    %v639 = vrot.slane %v634, %v638
    %v641 = vadd.f32 %v633, %v639
    %v642 = vxor.u32 %v641, 2147483648
    %v643 = vmul.f32 %v642, 1.442695
    %v644 = vpow.pop %v643
    %v645 = vadd.f32 %v644, 1.0
    %v646 = vrcp.pop %v645
    %v647 = vmul.f32 1.0, %v646
    %v648 = vtanh.pop %v641
    %650 = vrot.lane.b32.xlu0 %v82, 32
    %v651 = vpop.permute.xlu0 %650
    %v653 = vmul.f32 %v647, %v651
    %655 = vrot.lane.b32.xlu0 %v648, 64
    %v656 = vpop.permute.xlu0 %655
    %v658 = vmul.f32 %v647, %v656
    %660 = vrot.lane.b32.xlu0 %v658, 32
    %v661 = vpop.permute.xlu0 %660
    %v663 = vadd.f32 %v653, %v661
    %v664 = vtanh.pop %v663
    %666 = vrot.lane.b32.xlu0 %v664, 64
    %v667 = vpop.permute.xlu0 %666
    %v669 = vmul.f32 %v647, %v667
    %v670 = vld [vmem:[#allocation8 + $0x28] sm:$0xff]
    %v671 = vld [vmem:[#allocation8 + $0x70] sm:$0xff]
    %v672 = vld [vmem:[#allocation8 + $0xb8] sm:$0xff]
    %v673 = vld [vmem:[#allocation8 + $0x100] sm:$0xff]
    %v674 = vld [vmem:[%s6 + $0x4] sm:$0x1]
    %v676 = vlaneseq
    %v677 = vshrl.u32 %v676, 7
    %v678 = vsub.s32 0, %v677
    %v679 = vrot.slane %v674, %v678
    %682 = vrot.lane.b32.xlu0 %v669, 32
    %v683 = vpop.permute.xlu0 %682
    %v684 = vsel %vm174, %v683, 0
    %686 = vmatprep.subr.mxu0 0.0
    %687 = vmatpush1.msra.mxu0 %v670
    %688 = vmatprep.subr.mxu0 0.0
    %689 = vmatpush1.msra.mxu0 %v671
    %690 = vmatprep.subr.mxu0 0.0
    %691 = vmatpush1.msra.mxu0 %v672
    %692 = vmatprep.subr.mxu0 0.0
    %693 = vmatpush1.msra.mxu0 %v673
    %694 = vmatprep.subr.mxu0 0.0
    %695 = vmatpush1.msra.mxu0 0.0
    %696 = vmatprep.subr.mxu0 0.0
    %697 = vmatpush1.msra.mxu0 0.0
    %698 = vmatprep.subr.mxu0 0.0
    %699 = vmatpush1.msra.mxu0 0.0
    %700 = vmatprep.subr.mxu0 0.0
    %701 = vmatpush1.msra.mxu0 0.0
    %702 = vmatprep.subr.mxu0 0.0
    %703 = vmatpush1.msra.mxu0 0.0
    %704 = vmatprep.subr.mxu0 0.0
    %705 = vmatpush1.msra.mxu0 0.0
    %706 = vmatprep.subr.mxu0 0.0
    %707 = vmatpush1.msra.mxu0 0.0
    %708 = vmatprep.subr.mxu0 0.0
    %709 = vmatpush1.msra.mxu0 0.0
    %710 = vmatprep.subr.mxu0 0.0
    %711 = vmatpush1.msra.mxu0 0.0
    %712 = vmatprep.subr.mxu0 0.0
    %713 = vmatpush1.msra.mxu0 0.0
    %714 = vmatprep.subr.mxu0 0.0
    %715 = vmatpush1.msra.mxu0 0.0
    %716 = vmatprep.subr.mxu0 0.0
    %717 = vmatpush1.msra.mxu0 0.0
    %718 = vmatprep.subr.mxu0 0.0
    %719 = vmatpush1.msra.mxu0 0.0
    %720 = vmatprep.subr.mxu0 0.0
    %721 = vmatpush1.msra.mxu0 0.0
    %722 = vmatprep.subr.mxu0 0.0
    %723 = vmatpush1.msra.mxu0 0.0
    %724 = vmatprep.subr.mxu0 0.0
    %725 = vmatpush1.msra.mxu0 0.0
    %726 = vmatprep.subr.mxu0 0.0
    %727 = vmatpush1.msra.mxu0 0.0
    %728 = vmatprep.subr.mxu0 0.0
    %729 = vmatpush1.msra.mxu0 0.0
    %730 = vmatprep.subr.mxu0 0.0
    %731 = vmatpush1.msra.mxu0 0.0
    %732 = vmatprep.subr.mxu0 0.0
    %733 = vmatpush1.msra.mxu0 0.0
    %734 = vmatprep.subr.mxu0 0.0
    %735 = vmatpush1.msra.mxu0 0.0
    %736 = vmatprep.subr.mxu0 0.0
    %737 = vmatpush1.msra.mxu0 0.0
    %738 = vmatprep.subr.mxu0 0.0
    %739 = vmatpush1.msra.mxu0 0.0
    %740 = vmatprep.subr.mxu0 0.0
    %741 = vmatpush1.msra.mxu0 0.0
    %742 = vmatprep.subr.mxu0 0.0
    %743 = vmatpush1.msra.mxu0 0.0
    %744 = vmatprep.subr.mxu0 0.0
    %745 = vmatpush1.msra.mxu0 0.0
    %746 = vmatprep.subr.mxu0 0.0
    %747 = vmatpush1.msra.mxu0 0.0
    %748 = vmatprep.subr.mxu0 0.0
    %749 = vmatpush1.msra.mxu0 0.0
    %750 = vmatprep.mubr.f32.mxu0 0.0
    %751 = vmatmul.mubr.f32.gmra.mrb[0].mxu0 %v684
    %v752 = vpop.f32.mrb[0].mxu0
    %v753 = vadd.f32 %v679, %v752
    %v754 = vpop.f32.mrb[0].mxu0
    %755 = vdwg.mxu0
    %v756 = vmax.f32 %v753, 0.0
    %v757 = vld [vmem:[#allocation8 + $0x30] sm:$0xff]
    %v758 = vld [vmem:[#allocation8 + $0x78] sm:$0xff]
    %v759 = vld [vmem:[#allocation8 + $0xc0] sm:$0xff]
    %v760 = vld [vmem:[#allocation8 + $0x108] sm:$0xff]
    %v761 = vld [vmem:[%s6 + $0x5] sm:$0x1]
    %v763 = vlaneseq
    %v764 = vshrl.u32 %v763, 7
    %v765 = vsub.s32 0, %v764
    %v766 = vrot.slane %v761, %v765
    %v769 = vsel %vm174, %v756, 0
    %771 = vmatprep.subr.mxu0 0.0
    %772 = vmatpush1.msra.mxu0 %v757
    %773 = vmatprep.subr.mxu0 0.0
    %774 = vmatpush1.msra.mxu0 %v758
    %775 = vmatprep.subr.mxu0 0.0
    %776 = vmatpush1.msra.mxu0 %v759
    %777 = vmatprep.subr.mxu0 0.0
    %778 = vmatpush1.msra.mxu0 %v760
    %779 = vmatprep.subr.mxu0 0.0
    %780 = vmatpush1.msra.mxu0 0.0
    %781 = vmatprep.subr.mxu0 0.0
    %782 = vmatpush1.msra.mxu0 0.0
    %783 = vmatprep.subr.mxu0 0.0
    %784 = vmatpush1.msra.mxu0 0.0
    %785 = vmatprep.subr.mxu0 0.0
    %786 = vmatpush1.msra.mxu0 0.0
    %787 = vmatprep.subr.mxu0 0.0
    %788 = vmatpush1.msra.mxu0 0.0
    %789 = vmatprep.subr.mxu0 0.0
    %790 = vmatpush1.msra.mxu0 0.0
    %791 = vmatprep.subr.mxu0 0.0
    %792 = vmatpush1.msra.mxu0 0.0
    %793 = vmatprep.subr.mxu0 0.0
    %794 = vmatpush1.msra.mxu0 0.0
    %795 = vmatprep.subr.mxu0 0.0
    %796 = vmatpush1.msra.mxu0 0.0
    %797 = vmatprep.subr.mxu0 0.0
    %798 = vmatpush1.msra.mxu0 0.0
    %799 = vmatprep.subr.mxu0 0.0
    %800 = vmatpush1.msra.mxu0 0.0
    %801 = vmatprep.subr.mxu0 0.0
    %802 = vmatpush1.msra.mxu0 0.0
    %803 = vmatprep.subr.mxu0 0.0
    %804 = vmatpush1.msra.mxu0 0.0
    %805 = vmatprep.subr.mxu0 0.0
    %806 = vmatpush1.msra.mxu0 0.0
    %807 = vmatprep.subr.mxu0 0.0
    %808 = vmatpush1.msra.mxu0 0.0
    %809 = vmatprep.subr.mxu0 0.0
    %810 = vmatpush1.msra.mxu0 0.0
    %811 = vmatprep.subr.mxu0 0.0
    %812 = vmatpush1.msra.mxu0 0.0
    %813 = vmatprep.subr.mxu0 0.0
    %814 = vmatpush1.msra.mxu0 0.0
    %815 = vmatprep.subr.mxu0 0.0
    %816 = vmatpush1.msra.mxu0 0.0
    %817 = vmatprep.subr.mxu0 0.0
    %818 = vmatpush1.msra.mxu0 0.0
    %819 = vmatprep.subr.mxu0 0.0
    %820 = vmatpush1.msra.mxu0 0.0
    %821 = vmatprep.subr.mxu0 0.0
    %822 = vmatpush1.msra.mxu0 0.0
    %823 = vmatprep.subr.mxu0 0.0
    %824 = vmatpush1.msra.mxu0 0.0
    %825 = vmatprep.subr.mxu0 0.0
    %826 = vmatpush1.msra.mxu0 0.0
    %827 = vmatprep.subr.mxu0 0.0
    %828 = vmatpush1.msra.mxu0 0.0
    %829 = vmatprep.subr.mxu0 0.0
    %830 = vmatpush1.msra.mxu0 0.0
    %831 = vmatprep.subr.mxu0 0.0
    %832 = vmatpush1.msra.mxu0 0.0
    %833 = vmatprep.subr.mxu0 0.0
    %834 = vmatpush1.msra.mxu0 0.0
    %835 = vmatprep.mubr.f32.mxu0 0.0
    %836 = vmatmul.mubr.f32.gmra.mrb[0].mxu0 %v769
    %v837 = vpop.f32.mrb[0].mxu0
    %v838 = vadd.f32 %v766, %v837
    %v839 = vpop.f32.mrb[0].mxu0
    %840 = vdwg.mxu0
    %v841 = vmax.f32 %v838, 0.0
    %v842 = vld [vmem:[#allocation8 + $0x38] sm:$0xff]
    %v843 = vld [vmem:[#allocation8 + $0x80] sm:$0xff]
    %v844 = vld [vmem:[#allocation8 + $0xc8] sm:$0xff]
    %v845 = vld [vmem:[#allocation8 + $0x110] sm:$0xff]
    %v846 = vld [vmem:[%s6 + $0x6] sm:$0x1]
    %v848 = vlaneseq
    %v849 = vshrl.u32 %v848, 7
    %v850 = vsub.s32 0, %v849
    %v851 = vrot.slane %v846, %v850
    %v854 = vsel %vm174, %v841, 0
    %856 = vmatprep.subr.mxu0 0.0
    %857 = vmatpush1.msra.mxu0 %v842
    %858 = vmatprep.subr.mxu0 0.0
    %859 = vmatpush1.msra.mxu0 %v843
    %860 = vmatprep.subr.mxu0 0.0
    %861 = vmatpush1.msra.mxu0 %v844
    %862 = vmatprep.subr.mxu0 0.0
    %863 = vmatpush1.msra.mxu0 %v845
    %864 = vmatprep.subr.mxu0 0.0
    %865 = vmatpush1.msra.mxu0 0.0
    %866 = vmatprep.subr.mxu0 0.0
    %867 = vmatpush1.msra.mxu0 0.0
    %868 = vmatprep.subr.mxu0 0.0
    %869 = vmatpush1.msra.mxu0 0.0
    %870 = vmatprep.subr.mxu0 0.0
    %871 = vmatpush1.msra.mxu0 0.0
    %872 = vmatprep.subr.mxu0 0.0
    %873 = vmatpush1.msra.mxu0 0.0
    %874 = vmatprep.subr.mxu0 0.0
    %875 = vmatpush1.msra.mxu0 0.0
    %876 = vmatprep.subr.mxu0 0.0
    %877 = vmatpush1.msra.mxu0 0.0
    %878 = vmatprep.subr.mxu0 0.0
    %879 = vmatpush1.msra.mxu0 0.0
    %880 = vmatprep.subr.mxu0 0.0
    %881 = vmatpush1.msra.mxu0 0.0
    %882 = vmatprep.subr.mxu0 0.0
    %883 = vmatpush1.msra.mxu0 0.0
    %884 = vmatprep.subr.mxu0 0.0
    %885 = vmatpush1.msra.mxu0 0.0
    %886 = vmatprep.subr.mxu0 0.0
    %887 = vmatpush1.msra.mxu0 0.0
    %888 = vmatprep.subr.mxu0 0.0
    %889 = vmatpush1.msra.mxu0 0.0
    %890 = vmatprep.subr.mxu0 0.0
    %891 = vmatpush1.msra.mxu0 0.0
    %892 = vmatprep.subr.mxu0 0.0
    %893 = vmatpush1.msra.mxu0 0.0
    %894 = vmatprep.subr.mxu0 0.0
    %895 = vmatpush1.msra.mxu0 0.0
    %896 = vmatprep.subr.mxu0 0.0
    %897 = vmatpush1.msra.mxu0 0.0
    %898 = vmatprep.subr.mxu0 0.0
    %899 = vmatpush1.msra.mxu0 0.0
    %900 = vmatprep.subr.mxu0 0.0
    %901 = vmatpush1.msra.mxu0 0.0
    %902 = vmatprep.subr.mxu0 0.0
    %903 = vmatpush1.msra.mxu0 0.0
    %904 = vmatprep.subr.mxu0 0.0
    %905 = vmatpush1.msra.mxu0 0.0
    %906 = vmatprep.subr.mxu0 0.0
    %907 = vmatpush1.msra.mxu0 0.0
    %908 = vmatprep.subr.mxu0 0.0
    %909 = vmatpush1.msra.mxu0 0.0
    %910 = vmatprep.subr.mxu0 0.0
    %911 = vmatpush1.msra.mxu0 0.0
    %912 = vmatprep.subr.mxu0 0.0
    %913 = vmatpush1.msra.mxu0 0.0
    %914 = vmatprep.subr.mxu0 0.0
    %915 = vmatpush1.msra.mxu0 0.0
    %916 = vmatprep.subr.mxu0 0.0
    %917 = vmatpush1.msra.mxu0 0.0
    %918 = vmatprep.subr.mxu0 0.0
    %919 = vmatpush1.msra.mxu0 0.0
    %920 = vmatprep.mubr.f32.mxu0 0.0
    %921 = vmatmul.mubr.f32.gmra.mrb[0].mxu0 %v854
    %v922 = vpop.f32.mrb[0].mxu0
    %v923 = vadd.f32 %v851, %v922
    %v924 = vpop.f32.mrb[0].mxu0
    %925 = vdwg.mxu0
    %v926 = vmax.f32 %v923, 0.0
    %v927 = vld [vmem:[#allocation8 + $0x40] sm:$0xff]
    %v928 = vld [vmem:[#allocation8 + $0x88] sm:$0xff]
    %v929 = vld [vmem:[#allocation8 + $0xd0] sm:$0xff]
    %v930 = vld [vmem:[#allocation8 + $0x118] sm:$0xff]
    %v931 = vld [vmem:[%s6 + $0x7] sm:$0x1]
    %v933 = vlaneseq
    %v934 = vshrl.u32 %v933, 7
    %v935 = vsub.s32 0, %v934
    %v936 = vrot.slane %v931, %v935
    %v939 = vsel %vm174, %v926, 0
    %941 = vmatprep.subr.mxu0 0.0
    %942 = vmatpush1.msra.mxu0 %v927
    %943 = vmatprep.subr.mxu0 0.0
    %944 = vmatpush1.msra.mxu0 %v928
    %945 = vmatprep.subr.mxu0 0.0
    %946 = vmatpush1.msra.mxu0 %v929
    %947 = vmatprep.subr.mxu0 0.0
    %948 = vmatpush1.msra.mxu0 %v930
    %949 = vmatprep.subr.mxu0 0.0
    %950 = vmatpush1.msra.mxu0 0.0
    %951 = vmatprep.subr.mxu0 0.0
    %952 = vmatpush1.msra.mxu0 0.0
    %953 = vmatprep.subr.mxu0 0.0
    %954 = vmatpush1.msra.mxu0 0.0
    %955 = vmatprep.subr.mxu0 0.0
    %956 = vmatpush1.msra.mxu0 0.0
    %957 = vmatprep.subr.mxu0 0.0
    %958 = vmatpush1.msra.mxu0 0.0
    %959 = vmatprep.subr.mxu0 0.0
    %960 = vmatpush1.msra.mxu0 0.0
    %961 = vmatprep.subr.mxu0 0.0
    %962 = vmatpush1.msra.mxu0 0.0
    %963 = vmatprep.subr.mxu0 0.0
    %964 = vmatpush1.msra.mxu0 0.0
    %965 = vmatprep.subr.mxu0 0.0
    %966 = vmatpush1.msra.mxu0 0.0
    %967 = vmatprep.subr.mxu0 0.0
    %968 = vmatpush1.msra.mxu0 0.0
    %969 = vmatprep.subr.mxu0 0.0
    %970 = vmatpush1.msra.mxu0 0.0
    %971 = vmatprep.subr.mxu0 0.0
    %972 = vmatpush1.msra.mxu0 0.0
    %973 = vmatprep.subr.mxu0 0.0
    %974 = vmatpush1.msra.mxu0 0.0
    %975 = vmatprep.subr.mxu0 0.0
    %976 = vmatpush1.msra.mxu0 0.0
    %977 = vmatprep.subr.mxu0 0.0
    %978 = vmatpush1.msra.mxu0 0.0
    %979 = vmatprep.subr.mxu0 0.0
    %980 = vmatpush1.msra.mxu0 0.0
    %981 = vmatprep.subr.mxu0 0.0
    %982 = vmatpush1.msra.mxu0 0.0
    %983 = vmatprep.subr.mxu0 0.0
    %984 = vmatpush1.msra.mxu0 0.0
    %985 = vmatprep.subr.mxu0 0.0
    %986 = vmatpush1.msra.mxu0 0.0
    %987 = vmatprep.subr.mxu0 0.0
    %988 = vmatpush1.msra.mxu0 0.0
    %989 = vmatprep.subr.mxu0 0.0
    %990 = vmatpush1.msra.mxu0 0.0
    %991 = vmatprep.subr.mxu0 0.0
    %992 = vmatpush1.msra.mxu0 0.0
    %993 = vmatprep.subr.mxu0 0.0
    %994 = vmatpush1.msra.mxu0 0.0
    %995 = vmatprep.subr.mxu0 0.0
    %996 = vmatpush1.msra.mxu0 0.0
    %997 = vmatprep.subr.mxu0 0.0
    %998 = vmatpush1.msra.mxu0 0.0
    %999 = vmatprep.subr.mxu0 0.0
    %1000 = vmatpush1.msra.mxu0 0.0
    %1001 = vmatprep.subr.mxu0 0.0
    %1002 = vmatpush1.msra.mxu0 0.0
    %1003 = vmatprep.subr.mxu0 0.0
    %1004 = vmatpush1.msra.mxu0 0.0
    %1005 = vmatprep.mubr.f32.mxu0 0.0
    %1006 = vmatmul.mubr.f32.gmra.mrb[0].mxu0 %v939
    %v1007 = vpop.f32.mrb[0].mxu0
    %v1008 = vadd.f32 %v936, %v1007
    %v1009 = vpop.f32.mrb[0].mxu0
    %1010 = vdwg.mxu0
    %1011 = vrot.lane.b32.xlu0 %v669, 48
    %v1012 = vpop.permute.xlu0 %1011
    %1015 = vrot.lane.b32.xlu0 %v663, 16
    %v1016 = vpop.permute.xlu0 %1015
    %v1018 = vsel %vm92, %v1008, %v1012
    %vm1019 = vcmask 392192
    %v1020 = vsel %vm1019, %v1018, %v1016
    %vm1021 = vcmask 654336
    %v1022 = vsel %vm1021, %v1020, 0.0
    %1023 = vst [vmem:[#allocation10] sm:$0x3] %v1022
    // Predicated region
    $region46: #{tpu_custom_call.1} parent=1 // pred_check
      _
    $region47: #{tpu_custom_call.1} parent=1 // pred_check_branch
      %1025 = sbr.rel (0) target = $region49
    $region48: #{tpu_custom_call.1} parent=1 // pred_region
      %s1027 = ssub.s32 32, 32
      %1028 = vsyncadd [#allocation4], %s1027
      %s1030 = sshll.u32 [#allocation10], 4
      %s1031 = int_to_ptr.vmem [resolvable:$true] %s1030
      %1033 = dma.vmem_to_hbm [thread:$0]  %s1031, 32, %s7, [#allocation4]
    $region49: #{tpu_custom_call.1} parent=1 // pred_fallthru
      _
    // Predicated region
    $region50: #{tpu_custom_call.1} parent=1 // pred_check
      _
    $region51: #{tpu_custom_call.1} parent=1 // pred_check_branch
      %1035 = sbr.rel (0) target = $region53
    $region52: #{tpu_custom_call.1} parent=1 // pred_region
      %1036 = dma.done [#allocation4], 32
    $region53: #{tpu_custom_call.1} parent=1 // pred_fallthru
      _
    %1037 = vsyncpa [#allocation3], 1
    %1038 = vsyncpa [#allocation6], 1
    %1039 = vsyncpa [#allocation9], 1
    %1040 = vsyncpa [#allocation4], 1

</llo_original>
